<compile_context>
chip_gen: v5e
topology: v5e:2x2
jax: 0.10.0
libtpu: 0.0.40
codegen_flags: <defaults>
</compile_context>

<pallas_src>
import math

import jax
import jax.numpy as jnp
from jax.experimental import pallas as pl
from jax.experimental.pallas import tpu as pltpu  # noqa: F401  (imported per convention)


def _passthrough_kernel(x_ref, out_ref):
    # forward returns X unchanged.
    out_ref[...] = x_ref[...]


def _passthrough_pallas(x):
    B, IN = x.shape
    # Single-block identity kernel. Block shape equals the full array, so the
    # (8, 128) tiling constraint does not apply at this tiny shape.
    # NOTE: if this kernel is ever reused at scale, reshape wrapper-side to a
    # lane-dense (..., multiple-of-128) last dim and tile 512-1024 rows per
    # block (re-derive the VMEM budget per chip generation, esp. v7x's 64 MiB).
    return pl.pallas_call(
        _passthrough_kernel,
        out_shape=jax.ShapeDtypeStruct((B, IN), x.dtype),
        in_specs=[pl.BlockSpec((B, IN), lambda: (0, 0))],
        out_specs=pl.BlockSpec((B, IN), lambda: (0, 0)),
        input_output_aliases={0: 0},
    )(x)


# jit + input donation: without donation the {0: 0} alias degenerates into a
# protective HBM copy; with it, the output allocation is elided entirely.
_passthrough_jit = jax.jit(_passthrough_pallas, donate_argnums=0)


def my_module_forward(x, w=None, b=None):
    """Equivalent of MyModule.forward: self.lin(X) is computed and discarded in
    the PyTorch forward, so only the passthrough of X is materialized.
    w/b are accepted for module fidelity but unused (dead code)."""
    del w, b
    return _passthrough_jit(x)


if __name__ == "__main__":
    key = jax.random.PRNGKey(0)
    kx, kw, kb = jax.random.split(key, 3)

    B, IN, OUT = 8, 3, 1

    # Deterministic inputs / parameters (PyTorch Linear default init:
    # U(-1/sqrt(IN), 1/sqrt(IN))). w/b exist only for module fidelity.
    x = jax.random.normal(kx, (B, IN), dtype=jnp.float32)
    bound = 1.0 / math.sqrt(IN)
    w = jax.random.uniform(kw, (OUT, IN), minval=-bound, maxval=bound, dtype=jnp.float32)
    b = jax.random.uniform(kb, (OUT,), minval=-bound, maxval=bound, dtype=jnp.float32)

    # x's device buffer is donated to the kernel, so snapshot the expected
    # values on host before calling.
    x_expected = jax.device_get(x)

    out = my_module_forward(x, w, b)
    out = jax.block_until_ready(out)

    # forward returns X unchanged — verify passthrough semantics.
    assert out.shape == x_expected.shape
    assert jnp.allclose(out, x_expected), "passthrough mismatch"

    print("KERNEL_OK")
</pallas_src>

<mosaic_0001>
module attributes {stable_mosaic.version = 11 : i64} {
  func.func @_passthrough_kernel(%arg0: memref<8x3xf32, #tpu.memory_space<vmem>>, %arg1: memref<8x3xf32, #tpu.memory_space<vmem>>) attributes {dimension_semantics = [], scalar_prefetch = 0 : i64, scratch_operands = 0 : i64, tpu.core_type = #tpu.core_type<tc>} {
    %c0 = arith.constant 0 : index
    %c0_0 = arith.constant 0 : index
    %0 = vector.load %arg0[%c0, %c0_0] : memref<8x3xf32, #tpu.memory_space<vmem>>, vector<8x3xf32>
    %c0_1 = arith.constant 0 : index
    %c0_2 = arith.constant 0 : index
    %1 = vector.load %arg1[%c0_1, %c0_2] : memref<8x3xf32, #tpu.memory_space<vmem>>, vector<8x3xf32>
    tpu.vector_store %arg1[%c0_1, %c0_2], %0 {strides = array<i32>} : memref<8x3xf32, #tpu.memory_space<vmem>>, vector<8x3xf32>,
    return
  }
}

</mosaic_0001>

<llo_original>
// kernel: _passthrough_pallas.1
$region0: #{_passthrough_pallas.1}
  #allocation0 [shape = 'u32[]', space=smem, size = 0x4, offset = 0x4, fixed_abs, tag = 'smem constant byte address 0x4 - core index']
  #allocation1 [shape = 'u32[72,128]{1,0:T(1,128)}', space=vmem, size = 0x9000, scoped, tag = 'internal scratch']
  %s0 = inlined_call_operand.vmem [shape: f32[8,3], index: 0, kind: input, shape index: {}, may-alias: {0,1}]
  %s1 = inlined_call_operand.vmem [shape: f32[8,3], index: 1, kind: output, shape index: {}, may-alias: {0,1}]
  %s2 = sld [smem:[#allocation0]]
  $region14: #{_passthrough_pallas.1} parent=0
    _
  %s4 = ssub.s32 1, %s2
  %s5 = scalar_select 0, %s4, %s2
  // Predicated region
  $region2: #{_passthrough_pallas.1} parent=0 // pred_check
    _
  $region3: #{_passthrough_pallas.1} parent=0 // pred_check_branch
    %7 = sbr.rel (0) target = $region5
  $region4: #{_passthrough_pallas.1} parent=0 // pred_region
    _
  $region5: #{_passthrough_pallas.1} parent=0 // pred_fallthru
    _
  %v8 = vld [vmem:[%s0] sm:$0xff]
  %vm9 = vcmask 23552
  %10 = vst.msk [vmem:[%s1] sm:$0xff] %vm9, %v8
  // Predicated region
  $region6: #{_passthrough_pallas.1} parent=0 // pred_check
    _
  $region7: #{_passthrough_pallas.1} parent=0 // pred_check_branch
    %12 = sbr.rel (0) target = $region9
  $region8: #{_passthrough_pallas.1} parent=0 // pred_region
    _
  $region9: #{_passthrough_pallas.1} parent=0 // pred_fallthru
    _
  // Predicated region
  $region10: #{_passthrough_pallas.1} parent=0 // pred_check
    _
  $region11: #{_passthrough_pallas.1} parent=0 // pred_check_branch
    %14 = sbr.rel (0) target = $region13
  $region12: #{_passthrough_pallas.1} parent=0 // pred_region
    _
  $region13: #{_passthrough_pallas.1} parent=0 // pred_fallthru
    _

</llo_original>
